<compile_context>
chip_gen: v6e
topology: v6e:2x2x1
jax: 0.10.0
libtpu: 0.0.40
codegen_flags: <defaults>
</compile_context>

<pallas_src>
import functools

import jax
import jax.numpy as jnp
from jax.experimental import pallas as pl
from jax.experimental.pallas import tpu as pltpu


def _round_up(x, m):
    return ((x + m - 1) // m) * m


# ---------------------------------------------------------------------------
# Pallas kernel 1: fused im2col-matmul (bf16 MXU) + folded-BN affine + epilogue
#   modes: 'relu' | 'none' | 'gru_gates' | 'gru_cand'
# ---------------------------------------------------------------------------
def _mm_kernel(mode, cout, n_extra, *refs):
    a_ref, b_ref, s_ref, c_ref = refs[0], refs[1], refs[2], refs[3]
    extras = refs[4:4 + n_extra]
    o_ref = refs[-1]

    acc = jnp.dot(a_ref[...], b_ref[...], preferred_element_type=jnp.float32)
    acc = acc * s_ref[...] + c_ref[...]            # f32 affine (folded BN / bias)

    if mode == 'relu':
        out = jnp.maximum(acc, 0.0)
    elif mode == 'gru_gates':
        # gates conv of concat([x, h]) -> [r_pre | u_pre]; emit [r*h | u]
        h = extras[0][...]
        g = jax.nn.sigmoid(acc)
        lane = jax.lax.broadcasted_iota(jnp.int32, g.shape, 1)
        out = jnp.where(lane < cout, g * h, g)
    elif mode == 'gru_cand':
        # candidate conv; emit h_new = u*h + (1-u)*tanh(cand)
        u = extras[0][...]
        h = extras[1][...]
        out = u * h + (1.0 - u) * jnp.tanh(acc)
    else:                                           # 'none'
        out = acc
    o_ref[...] = out


@functools.lru_cache(maxsize=None)
def _matmul_call(M, K, N, mode, cout, n_extra):
    TM = 256 if M >= 512 else 128
    Mp, Kp, Np = _round_up(M, TM), _round_up(K, 128), _round_up(N, 128)

    def f(a, b, s, c, *extras):
        a_p = jnp.pad(a, ((0, Mp - M), (0, Kp - K))).astype(jnp.bfloat16)
        b_p = jnp.pad(b, ((0, Kp - K), (0, Np - N))).astype(jnp.bfloat16)
        s_p = jnp.pad(s, (0, Np - N)).reshape(1, Np)
        c_p = jnp.pad(c, (0, Np - N)).reshape(1, Np)
        ex_p = [jnp.pad(e, ((0, Mp - M), (0, Np - e.shape[1]))) for e in extras]
        in_specs = [
            pl.BlockSpec((TM, Kp), lambda i: (i, 0)),
            pl.BlockSpec((Kp, Np), lambda i: (0, 0)),
            pl.BlockSpec((1, Np), lambda i: (0, 0)),
            pl.BlockSpec((1, Np), lambda i: (0, 0)),
        ] + [pl.BlockSpec((TM, Np), lambda i: (i, 0))] * n_extra
        out = pl.pallas_call(
            functools.partial(_mm_kernel, mode, cout, n_extra),
            out_shape=jax.ShapeDtypeStruct((Mp, Np), jnp.float32),
            grid=(Mp // TM,),
            in_specs=in_specs,
            out_specs=pl.BlockSpec((TM, Np), lambda i: (i, 0)),
            compiler_params=pltpu.CompilerParams(
                dimension_semantics=("parallel",)),
        )(a_p, b_p, s_p, c_p, *ex_p)
        return out[:M, :N]

    return jax.jit(f)


# ---------------------------------------------------------------------------
# Pallas kernel 2: tiled fused elementwise (cost-volume negative variance)
# ---------------------------------------------------------------------------
@functools.lru_cache(maxsize=None)
def _ew_call(fn, n_total, n_in):
    COLS = 512
    rows_needed = -(-n_total // COLS)
    tr = min(256, _round_up(rows_needed, 8))
    rows = _round_up(rows_needed, tr)
    pad = rows * COLS - n_total

    def kernel(*refs):
        refs[n_in][...] = fn(*[r[...] for r in refs[:n_in]])

    def f(*flat_arrays):
        arrs = [jnp.pad(a, (0, pad)).reshape(rows, COLS) for a in flat_arrays]
        out = pl.pallas_call(
            kernel,
            out_shape=jax.ShapeDtypeStruct((rows, COLS), jnp.float32),
            grid=(rows // tr,),
            in_specs=[pl.BlockSpec((tr, COLS), lambda i: (i, 0))] * n_in,
            out_specs=pl.BlockSpec((tr, COLS), lambda i: (i, 0)),
            compiler_params=pltpu.CompilerParams(
                dimension_semantics=("parallel",)),
        )(*arrs)
        return out.reshape(-1)[:n_total]

    return jax.jit(f)


def pallas_elementwise(fn, *arrays):
    shape = arrays[0].shape
    n = arrays[0].size
    flat = [a.reshape(-1) for a in arrays]
    out = _ew_call(fn, n, len(arrays))(*flat)
    return out.reshape(shape)


@functools.lru_cache(maxsize=None)
def _neg_variance_fn(inv_v):
    # inv_v is a compile-time Python float -> no constant array materialized.
    def f(vsum, vsq):
        return -(vsq * inv_v - (vsum * inv_v) ** 2)
    return f


# ---------------------------------------------------------------------------
# Pallas kernel 3: softmax over depth + depth regression + photometric conf.
# ---------------------------------------------------------------------------
def _depth_conf_kernel(D, TL, logits_ref, dv_ref, depth_ref, conf_ref):
    x = logits_ref[...].reshape(D, TL)
    m = jnp.max(x, axis=0, keepdims=True)
    e = jnp.exp(x - m)
    p = e / jnp.sum(e, axis=0, keepdims=True)                     # softmax over D
    dv = dv_ref[...].reshape(D, 1)
    depth = jnp.sum(p * dv, axis=0, keepdims=True)                # (1, TL)

    iota_f = jax.lax.broadcasted_iota(jnp.float32, (D, TL), 0)
    idx = jnp.floor(jnp.sum(p * iota_f, axis=0, keepdims=True)).astype(jnp.int32)

    # 4 * avg_pool3d(pad(prob, (1, 2)), window 4, stride 1) == sum over [d-1, d+2]
    ppad = jnp.concatenate(
        [jnp.zeros((1, TL), jnp.float32), p, jnp.zeros((2, TL), jnp.float32)],
        axis=0)                                                   # (D+3, TL)
    s4 = ppad[0:D] + ppad[1:D + 1] + ppad[2:D + 2] + ppad[3:D + 3]  # (D, TL)
    iota_i = jax.lax.broadcasted_iota(jnp.int32, (D, TL), 0)
    conf = jnp.sum(jnp.where(iota_i == idx, s4, 0.0), axis=0, keepdims=True)

    depth_ref[...] = depth.reshape(1, 1, TL)
    conf_ref[...] = conf.reshape(1, 1, TL)


def depth_and_confidence(logits, depth_values):
    # logits: [B, D, H, W]; depth_values: [B, D]
    B, D, H, W = logits.shape
    HW = H * W
    TL = min(512, _round_up(HW, 128))
    HWp = _round_up(HW, TL)
    lg = jnp.pad(logits.reshape(B, D, HW), ((0, 0), (0, 0), (0, HWp - HW)))
    dv = depth_values.reshape(B, 1, D)
    depth, conf = pl.pallas_call(
        functools.partial(_depth_conf_kernel, D, TL),
        out_shape=(jax.ShapeDtypeStruct((B, 1, HWp), jnp.float32),
                   jax.ShapeDtypeStruct((B, 1, HWp), jnp.float32)),
        grid=(B, HWp // TL),
        in_specs=[pl.BlockSpec((1, D, TL), lambda b, t: (b, 0, t)),
                  pl.BlockSpec((1, 1, D), lambda b, t: (b, 0, 0))],
        out_specs=(pl.BlockSpec((1, 1, TL), lambda b, t: (b, 0, t)),
                   pl.BlockSpec((1, 1, TL), lambda b, t: (b, 0, t))),
        compiler_params=pltpu.CompilerParams(
            dimension_semantics=("parallel", "parallel")),
    )(lg, dv)
    depth = depth.reshape(B, HWp)[:, :HW].reshape(B, H, W)
    conf = conf.reshape(B, HWp)[:, :HW].reshape(B, H, W)
    return depth, conf


# ---------------------------------------------------------------------------
# Conv layers built on the Pallas matmul kernel (im2col in plain-JAX glue)
# TODO(synk): the 9x im2col patch slab is still built by XLA in HBM; folding
# the kh*kw tap accumulation into a K grid axis inside the kernel is the next
# step to cut activation traffic for the early memory-bound layers.
# ---------------------------------------------------------------------------
def conv2d(x, p, stride, pad, mode='relu', extras=(), cout=0):
    # x: [B, H, W, Cin];  p['w']: [O, I, kh, kw]
    B, H, W, Ci = x.shape
    O, I, kh, kw = p['w'].shape
    xp = jnp.pad(x, ((0, 0), (pad, pad), (pad, pad), (0, 0)))
    OH = (H + 2 * pad - kh) // stride + 1
    OW = (W + 2 * pad - kw) // stride + 1
    patches = []
    for i in range(kh):
        for j in range(kw):
            patches.append(xp[:, i:i + (OH - 1) * stride + 1:stride,
                               j:j + (OW - 1) * stride + 1:stride, :])
    a = jnp.concatenate(patches, axis=-1).reshape(B * OH * OW, kh * kw * Ci)
    wm = jnp.transpose(p['w'], (2, 3, 1, 0)).reshape(kh * kw * Ci, O)
    ex = [e.reshape(B * OH * OW, e.shape[-1]) for e in extras]
    out = _matmul_call(B * OH * OW, kh * kw * Ci, O, mode, cout, len(extras))(
        a, wm, p['scale'], p['bias'], *ex)
    return out.reshape(B, OH, OW, O)


def conv_transpose2d(x, p, stride=2, pad=1, out_pad=1, mode='relu'):
    # ConvTranspose2d(k=3, stride=2, padding=1, output_padding=1) as dilated conv.
    B, H, W, C = x.shape
    k = p['w'].shape[2]
    xd = jnp.zeros((B, (H - 1) * stride + 1, (W - 1) * stride + 1, C),
                   x.dtype).at[:, ::stride, ::stride, :].set(x)
    lo = k - 1 - pad
    hi = k - 1 - pad + out_pad
    xp = jnp.pad(xd, ((0, 0), (lo, hi), (lo, hi), (0, 0)))
    return conv2d(xp, p, stride=1, pad=0, mode=mode)


# ---------------------------------------------------------------------------
# UNetDS2BN feature extractor
# ---------------------------------------------------------------------------
def unet_forward(p, x):
    x1 = conv2d(x, p['conv1_0'], 2, 1)
    x2 = conv2d(x1, p['conv2_0'], 2, 1)
    x3 = conv2d(x2, p['conv3_0'], 2, 1)
    x4 = conv2d(x3, p['conv4_0'], 2, 1)
    y1 = conv2d(conv2d(x, p['conv0_1'], 1, 1), p['conv0_2'], 1, 1)
    y2 = conv2d(conv2d(x1, p['conv1_1'], 1, 1), p['conv1_2'], 1, 1)
    y3 = conv2d(conv2d(x2, p['conv2_1'], 1, 1), p['conv2_2'], 1, 1, mode='none')
    y4 = conv2d(conv2d(x3, p['conv3_1'], 1, 1), p['conv3_2'], 1, 1)
    y5 = conv_transpose2d(conv2d(conv2d(x4, p['conv4_1'], 1, 1),
                                 p['conv4_2'], 1, 1), p['conv5_0'])
    y6 = conv_transpose2d(conv2d(conv2d(jnp.concatenate([y5, y4], -1),
                                        p['conv5_1'], 1, 1), p['conv5_2'], 1, 1),
                          p['conv6_0'])
    y7 = conv_transpose2d(conv2d(conv2d(jnp.concatenate([y6, y3], -1),
                                        p['conv6_1'], 1, 1), p['conv6_2'], 1, 1),
                          p['conv7_0'])
    y8 = conv_transpose2d(conv2d(conv2d(jnp.concatenate([y7, y2], -1),
                                        p['conv7_1'], 1, 1), p['conv7_2'], 1, 1),
                          p['conv8_0'])
    y9 = conv2d(conv2d(conv2d(jnp.concatenate([y8, y1], -1),
                              p['conv8_1'], 1, 1), p['conv8_2'], 1, 1),
                p['conv9_0'], 2, 2)
    y10 = conv2d(conv2d(y9, p['conv9_1'], 1, 1), p['conv9_2'], 1, 1)
    y10 = conv2d(y10, p['conv10_0'], 2, 2)
    y10 = conv2d(conv2d(y10, p['conv10_1'], 1, 1), p['conv10_2'], 1, 1, mode='none')
    return y10  # [B, H/4, W/4, 32]


# ---------------------------------------------------------------------------
# ConvGRUCell2: gate nonlinearities fully fused into the conv matmul epilogues.
#   gates conv emits [r*h | u] (sigmoid fused); cand conv emits h_new directly.
# ---------------------------------------------------------------------------
def conv_gru(p, x, h):
    cout = h.shape[-1]
    comb = jnp.concatenate([x, h], axis=-1)
    gates = conv2d(comb, p['gates'], 1, 1, mode='gru_gates', extras=(h,),
                   cout=cout)                               # [B,h,w, 2*cout]
    rh = gates[..., :cout]
    u = gates[..., cout:]
    h_new = conv2d(jnp.concatenate([x, rh], axis=-1), p['cand'], 1, 1,
                   mode='gru_cand', extras=(u, h), cout=cout)
    return h_new, h_new


# ---------------------------------------------------------------------------
# Homography warping for ALL depth planes at once (plain JAX: data-dependent
# bilinear gather; no clean Pallas gather).
# TODO(synk): grid_sample-style gather stays in JAX.
# ---------------------------------------------------------------------------
def homo_warping_alldepth(src_fea, src_proj, ref_proj, depth_values):
    # src_fea: [B, H, W, C]; projs: [B, 4, 4]; depth_values: [B, D]
    B, H, W, C = src_fea.shape
    D = depth_values.shape[1]
    HW = H * W
    proj = src_proj @ jnp.linalg.inv(ref_proj)
    rot = proj[:, :3, :3]
    trans = proj[:, :3, 3:4]                                          # [B,3,1]
    ys, xs = jnp.meshgrid(jnp.arange(H, dtype=jnp.float32),
                          jnp.arange(W, dtype=jnp.float32), indexing='ij')
    xyz = jnp.stack([xs.reshape(-1), ys.reshape(-1),
                     jnp.ones(HW, jnp.float32)], axis=0)              # [3, HW]
    rot_xyz = jnp.einsum('bij,jk->bik', rot, xyz)                     # [B,3,HW]
    proj_xyz = (rot_xyz[:, None] * depth_values[:, :, None, None]
                + trans[:, None])                                     # [B,D,3,HW]
    z = proj_xyz[:, :, 2]
    px = proj_xyz[:, :, 0] / z
    py = proj_xyz[:, :, 1] / z                                        # [B,D,HW]

    feat = src_fea.reshape(B, HW, C)
    x0 = jnp.floor(px)
    y0 = jnp.floor(py)

    def gather(xi, yi):
        valid = ((xi >= 0) & (xi <= W - 1) &
                 (yi >= 0) & (yi <= H - 1)).astype(jnp.float32)
        xi_c = jnp.clip(xi, 0, W - 1).astype(jnp.int32)
        yi_c = jnp.clip(yi, 0, H - 1).astype(jnp.int32)
        idx = (yi_c * W + xi_c).reshape(B, D * HW)
        idx3 = jnp.broadcast_to(idx[:, :, None], (B, D * HW, C))
        g = jnp.take_along_axis(feat, idx3, axis=1).reshape(B, D, HW, C)
        return g * valid[..., None]

    wx1 = (px - x0)[..., None]
    wx0 = 1.0 - wx1
    wy1 = (py - y0)[..., None]
    wy0 = 1.0 - wy1
    out = (wy0 * wx0 * gather(x0, y0) + wy0 * wx1 * gather(x0 + 1, y0) +
           wy1 * wx0 * gather(x0, y0 + 1) + wy1 * wx1 * gather(x0 + 1, y0 + 1))
    return out.reshape(B, D, H, W, C)


# ---------------------------------------------------------------------------
# RMVSNet forward
# ---------------------------------------------------------------------------
def rmvsnet_forward(params, imgs, proj_matrices, depth_values):
    # imgs: [B, V, 3, H, W];  proj: [B, V, 4, 4];  depths: [B, D]
    B, V = imgs.shape[0], imgs.shape[1]
    D = depth_values.shape[1]
    imgs_nhwc = jnp.transpose(imgs, (0, 1, 3, 4, 2))
    features = [unet_forward(params['unet'], imgs_nhwc[:, v]) for v in range(V)]
    ref_feature, src_features = features[0], features[1:]
    ref_proj = proj_matrices[:, 0]
    src_projs = [proj_matrices[:, v] for v in range(1, V)]

    Bn, h, w, C = ref_feature.shape

    # Batched cost-volume accumulation over all D depth planes at once.
    vol_sum = jnp.broadcast_to(ref_feature[:, None], (Bn, D, h, w, C))
    vol_sq = vol_sum * vol_sum
    for src_fea, src_proj in zip(src_features, src_projs):
        warped = homo_warping_alldepth(src_fea, src_proj, ref_proj, depth_values)
        vol_sum = vol_sum + warped
        vol_sq = vol_sq + warped * warped
    neg_var = pallas_elementwise(_neg_variance_fn(1.0 / V), vol_sum, vol_sq)

    state1 = jnp.zeros((Bn, h, w, 16), jnp.float32)
    state2 = jnp.zeros((Bn, h, w, 4), jnp.float32)
    state3 = jnp.zeros((Bn, h, w, 2), jnp.float32)

    def step(carry, nv):
        s1, s2, s3 = carry
        c1, s1 = conv_gru(params['gru1'], nv, s1)
        c2, s2 = conv_gru(params['gru2'], c1, s2)
        c3, s3 = conv_gru(params['gru3'], c2, s3)
        reg = conv2d(c3, params['conv2d'], 1, 1, mode='none')     # [B, h, w, 1]
        return (s1, s2, s3), reg[..., 0]

    _, logits = jax.lax.scan(step, (state1, state2, state3),
                             jnp.transpose(neg_var, (1, 0, 2, 3, 4)))
    logits = jnp.transpose(logits, (1, 0, 2, 3))                  # [B, D, h, w]
    depth, conf = depth_and_confidence(logits, depth_values)
    return {'depth': depth, 'photometric_confidence': conf}


# ---------------------------------------------------------------------------
# Deterministic parameter init (synthetic; matches the PyTorch layer shapes)
# ---------------------------------------------------------------------------
def _cbr(key, cin, cout, k):
    k1, k2, k3 = jax.random.split(key, 3)
    fan = cin * k * k
    w = jax.random.normal(k1, (cout, cin, k, k), jnp.float32) / jnp.sqrt(fan)
    gamma = 1.0 + 0.1 * jax.random.normal(k2, (cout,), jnp.float32)
    beta = 0.1 * jax.random.normal(k3, (cout,), jnp.float32)
    scale = gamma / jnp.sqrt(1.0 + 1e-5)   # eval BN: running_mean=0, running_var=1
    return dict(w=w, scale=scale, bias=beta)


def _conv(key, cin, cout, k):
    k1, k2 = jax.random.split(key, 2)
    fan = cin * k * k
    w = jax.random.normal(k1, (cout, cin, k, k), jnp.float32) / jnp.sqrt(fan)
    b = 0.01 * jax.random.normal(k2, (cout,), jnp.float32)
    return dict(w=w, scale=jnp.ones((cout,), jnp.float32), bias=b)


def _ctbr(key, cin, cout, k):
    k1, k2, k3 = jax.random.split(key, 3)
    fan = cin * k * k
    wt = jax.random.normal(k1, (cin, cout, k, k), jnp.float32) / jnp.sqrt(fan)
    # equivalent direct-conv weight: swap channel dims and flip spatially
    w = jnp.transpose(wt, (1, 0, 2, 3))[:, :, ::-1, ::-1]
    gamma = 1.0 + 0.1 * jax.random.normal(k2, (cout,), jnp.float32)
    beta = 0.1 * jax.random.normal(k3, (cout,), jnp.float32)
    return dict(w=w, scale=gamma / jnp.sqrt(1.0 + 1e-5), bias=beta)


def _gru(key, cin, cout, k=3):
    k1, k2 = jax.random.split(key, 2)
    return dict(gates=_conv(k1, cin + cout, 2 * cout, k),
                cand=_conv(k2, cin + cout, cout, k))


def init_params(key):
    keys = iter(jax.random.split(key, 64))
    u = {}
    u['conv1_0'] = _cbr(next(keys), 3, 16, 3)
    u['conv2_0'] = _cbr(next(keys), 16, 32, 3)
    u['conv3_0'] = _cbr(next(keys), 32, 64, 3)
    u['conv4_0'] = _cbr(next(keys), 64, 128, 3)
    u['conv0_1'] = _cbr(next(keys), 3, 8, 3)
    u['conv0_2'] = _cbr(next(keys), 8, 8, 3)
    u['conv1_1'] = _cbr(next(keys), 16, 16, 3)
    u['conv1_2'] = _cbr(next(keys), 16, 16, 3)
    u['conv2_1'] = _cbr(next(keys), 32, 32, 3)
    u['conv2_2'] = _conv(next(keys), 32, 32, 3)
    u['conv3_1'] = _cbr(next(keys), 64, 64, 3)
    u['conv3_2'] = _cbr(next(keys), 64, 64, 3)
    u['conv4_1'] = _cbr(next(keys), 128, 128, 3)
    u['conv4_2'] = _cbr(next(keys), 128, 128, 3)
    u['conv5_0'] = _ctbr(next(keys), 128, 64, 3)
    u['conv5_1'] = _cbr(next(keys), 128, 64, 3)
    u['conv5_2'] = _cbr(next(keys), 64, 64, 3)
    u['conv6_0'] = _ctbr(next(keys), 64, 32, 3)
    u['conv6_1'] = _cbr(next(keys), 64, 32, 3)
    u['conv6_2'] = _cbr(next(keys), 32, 32, 3)
    u['conv7_0'] = _ctbr(next(keys), 32, 16, 3)
    u['conv7_1'] = _cbr(next(keys), 32, 16, 3)
    u['conv7_2'] = _cbr(next(keys), 16, 16, 3)
    u['conv8_0'] = _ctbr(next(keys), 16, 8, 3)
    u['conv8_1'] = _cbr(next(keys), 16, 8, 3)
    u['conv8_2'] = _cbr(next(keys), 8, 8, 3)
    u['conv9_0'] = _cbr(next(keys), 8, 16, 5)
    u['conv9_1'] = _cbr(next(keys), 16, 16, 3)
    u['conv9_2'] = _cbr(next(keys), 16, 16, 3)
    u['conv10_0'] = _cbr(next(keys), 16, 32, 5)
    u['conv10_1'] = _cbr(next(keys), 32, 32, 3)
    u['conv10_2'] = _conv(next(keys), 32, 32, 3)
    return dict(unet=u,
                gru1=_gru(next(keys), 32, 16),
                gru2=_gru(next(keys), 16, 4),
                gru3=_gru(next(keys), 4, 2),
                conv2d=_conv(next(keys), 2, 1, 3))


if __name__ == "__main__":
    key = jax.random.PRNGKey(0)
    kp, ki = jax.random.split(key)
    params = init_params(kp)

    B, V, H, W, D = 1, 2, 32, 32, 4
    imgs = 0.5 * jax.random.normal(ki, (B, V, 3, H, W), jnp.float32)

    # Projection matrices at the feature resolution (H/4 x W/4):
    # shared intrinsics + a small horizontal baseline for the source view.
    intr = jnp.array([[4.0, 0.0, 4.0, 0.0],
                      [0.0, 4.0, 4.0, 0.0],
                      [0.0, 0.0, 1.0, 0.0],
                      [0.0, 0.0, 0.0, 1.0]], jnp.float32)
    extr_ref = jnp.eye(4, dtype=jnp.float32)
    extr_src = jnp.eye(4, dtype=jnp.float32).at[0, 3].set(0.2)
    proj_matrices = jnp.stack([intr @ extr_ref, intr @ extr_src], axis=0)[None]
    proj_matrices = jnp.tile(proj_matrices, (B, 1, 1, 1))            # [B, V, 4, 4]
    depth_values = jnp.tile(jnp.linspace(2.0, 4.0, D, dtype=jnp.float32)[None],
                            (B, 1))                                  # [B, D]

    fwd = jax.jit(rmvsnet_forward)
    out = fwd(params, imgs, proj_matrices, depth_values)
    jax.block_until_ready(out)
    assert out['depth'].shape == (B, H // 4, W // 4)
    assert out['photometric_confidence'].shape == (B, H // 4, W // 4)
    print("KERNEL_OK")
</pallas_src>

<mosaic_0001>
module attributes {stable_mosaic.version = 11 : i64} {
  func.func @_mm_kernel(%arg0: i32, %arg1: memref<128x128xbf16, #tpu.memory_space<vmem>>, %arg2: memref<128x128xbf16, #tpu.memory_space<vmem>>, %arg3: memref<1x128xf32, #tpu.memory_space<vmem>>, %arg4: memref<1x128xf32, #tpu.memory_space<vmem>>, %arg5: memref<128x128xf32, #tpu.memory_space<vmem>>) attributes {dimension_semantics = [#tpu.dimension_semantics<parallel>], iteration_bounds = array<i64: 2>, scalar_prefetch = 0 : i64, scratch_operands = 0 : i64, tpu.core_type = #tpu.core_type<tc>, window_params = [{transform_indices = @transform_0, window_bounds = array<i64: 128, 128>}, {pipeline_mode = #tpu.pipeline_mode<synchronous>, transform_indices = @transform_1, window_bounds = array<i64: 128, 128>}, {pipeline_mode = #tpu.pipeline_mode<synchronous>, transform_indices = @transform_2, window_bounds = array<i64: 1, 128>}, {pipeline_mode = #tpu.pipeline_mode<synchronous>, transform_indices = @transform_3, window_bounds = array<i64: 1, 128>}, {transform_indices = @transform_4, window_bounds = array<i64: 128, 128>}]} {
    %c0 = arith.constant 0 : index
    %c0_0 = arith.constant 0 : index
    %0 = vector.load %arg1[%c0, %c0_0] : memref<128x128xbf16, #tpu.memory_space<vmem>>, vector<128x128xbf16>
    %c0_1 = arith.constant 0 : index
    %c0_2 = arith.constant 0 : index
    %1 = vector.load %arg2[%c0_1, %c0_2] : memref<128x128xbf16, #tpu.memory_space<vmem>>, vector<128x128xbf16>
    %cst = arith.constant dense<0.000000e+00> : vector<128x128xf32>
    %2 = tpu.matmul %0, %1, %cst {dimension_numbers = #tpu.dot_dimension_numbers<[1], [0], [0], [1], [0, 0, 1, 1], [], []>} : vector<128x128xbf16>, vector<128x128xbf16>, vector<128x128xf32> -> vector<128x128xf32>
    %c0_3 = arith.constant 0 : index
    %c0_4 = arith.constant 0 : index
    %3 = vector.load %arg3[%c0_3, %c0_4] : memref<1x128xf32, #tpu.memory_space<vmem>>, vector<1x128xf32>
    %4 = vector.broadcast %3 : vector<1x128xf32> to vector<128x128xf32>
    %5 = arith.mulf %2, %4 : vector<128x128xf32>
    %c0_5 = arith.constant 0 : index
    %c0_6 = arith.constant 0 : index
    %6 = vector.load %arg4[%c0_5, %c0_6] : memref<1x128xf32, #tpu.memory_space<vmem>>, vector<1x128xf32>
    %7 = vector.broadcast %6 : vector<1x128xf32> to vector<128x128xf32>
    %8 = arith.addf %5, %7 : vector<128x128xf32>
    %cst_7 = arith.constant 0.000000e+00 : f32
    %9 = vector.broadcast %cst_7 : f32 to vector<128x128xf32>
    %10 = arith.maximumf %8, %9 : vector<128x128xf32>
    %c0_8 = arith.constant 0 : index
    %c0_9 = arith.constant 0 : index
    %11 = vector.load %arg5[%c0_8, %c0_9] : memref<128x128xf32, #tpu.memory_space<vmem>>, vector<128x128xf32>
    tpu.vector_store %arg5[%c0_8, %c0_9], %10 {strides = array<i32>} : memref<128x128xf32, #tpu.memory_space<vmem>>, vector<128x128xf32>,
    return
  }
  func.func @transform_0(%arg0: i32) -> (i32, i32) {
    %c0_i32 = arith.constant 0 : i32
    %c0_i32_0 = arith.constant 0 : i32
    return %arg0, %c0_i32 : i32, i32
  }
  func.func @transform_1(%arg0: i32) -> (i32, i32) {
    %c0_i32 = arith.constant 0 : i32
    %c0_i32_0 = arith.constant 0 : i32
    %c0_i32_1 = arith.constant 0 : i32
    return %c0_i32, %c0_i32_0 : i32, i32
  }
  func.func @transform_2(%arg0: i32) -> (i32, i32) {
    %c0_i32 = arith.constant 0 : i32
    %c0_i32_0 = arith.constant 0 : i32
    %c0_i32_1 = arith.constant 0 : i32
    return %c0_i32, %c0_i32_0 : i32, i32
  }
  func.func @transform_3(%arg0: i32) -> (i32, i32) {
    %c0_i32 = arith.constant 0 : i32
    %c0_i32_0 = arith.constant 0 : i32
    %c0_i32_1 = arith.constant 0 : i32
    return %c0_i32, %c0_i32_0 : i32, i32
  }
  func.func @transform_4(%arg0: i32) -> (i32, i32) {
    %c0_i32 = arith.constant 0 : i32
    %c0_i32_0 = arith.constant 0 : i32
    return %arg0, %c0_i32 : i32, i32
  }
}

</mosaic_0001>

<llo_original>
// kernel: f.1
$region0: #{f.1}
  #allocation0 [shape = 'u32[]', space=smem, size = 0x4, offset = 0x4, fixed_abs, tag = 'smem constant byte address 0x4 - core index']
  #allocation1 [shape = 'u32[144,128]{1,0:T(1,128)}', space=vmem, size = 0x12000, scoped, tag = 'internal scratch']
  %s0 = inlined_call_operand.vmem [shape: bf16[256,128], index: 0, kind: input, shape index: {}]
  %s1 = inlined_call_operand.vmem [shape: bf16[128,128], index: 1, kind: input, shape index: {}]
  %s2 = inlined_call_operand.vmem [shape: f32[1,128], index: 2, kind: input, shape index: {}]
  %s3 = inlined_call_operand.vmem [shape: f32[1,128], index: 3, kind: input, shape index: {}]
  %s4 = inlined_call_operand.vmem [shape: f32[256,128], index: 4, kind: output, shape index: {}]
  %s5 = sld [smem:[#allocation0]]
  $region49: #{f.1} parent=0
    _
  %s7 = ssub.s32 1, %s5
  %s8 = scalar_select 0, %s7, %s5
  loop: start=0, step=1, limit=4
  $region2: #{f.1} parent=0 // loop_pre_header
    _
  $region3: #{f.1} parent=0 // loop_header
    %s10 = sphi 0, %s14
    %p11 = scmp.ge.s32.totalorder %s10, 4
    %s20 = sphi 0, %s22
    %s23 = sphi 0, %s20
    %s24 = sphi 0, %s23
    %s40 = sphi 0, %s24
    %s44 = sphi 0, %s44
    %s46 = sphi 0, %s44
    %s47 = sphi 0, %s46
    %s61 = sphi 0, %s47
    %s65 = sphi 0, %s65
    %s67 = sphi 0, %s65
    %s68 = sphi 0, %s67
    %s82 = sphi 0, %s68
    %s86 = sphi 0, %s86
    %s88 = sphi 0, %s86
    %s89 = sphi 0, %s88
    %s103 = sphi 0, %s89
    %s109 = sphi 0, %s111
    %s112 = sphi 0, %s109
    %s113 = sphi 0, %s112
    %s129 = sphi 0, %s113
  $region4: #{f.1} parent=0 // loop_header_branch
    %13 = sbr.rel (%p11) target = $region8
  $region5: #{f.1} parent=0 // loop_body
    %s15 = ssub.s32 %s10, 1
    %s16 = ssub.s32 %s10, 2
    %s17 = sadd.s32 %s10, 1
    %s18 = ssub.s32 %s10, %s17
    %p19 = scmp.eq.s32.totalorder %s18, 0
    %s21 = sadd.s32 %s20, 1
    %s22 = scalar_select %p19, %s20, %s21
    %p25 = pneg %p19
    %p26 = scmp.eq.s32.totalorder %s10, 1
    %p27 = por %p25, %p26
    %p28 = scmp.ne.s32.totalorder %s20, %s23
    %p29 = scmp.eq.s32.totalorder %s10, 0
    %p30 = por %p28, %p29
    %p31 = scmp.ne.s32.totalorder %s20, %s23
    %p32 = scmp.eq.s32.totalorder %s15, 1
    %p33 = por %p31, %p32
    %p34 = scmp.ne.s32.totalorder %s23, %s24
    %p35 = scmp.eq.s32.totalorder %s15, 0
    %p36 = por %p34, %p35
    %p37 = scmp.ne.s32.totalorder %s23, %s24
    %p38 = scmp.eq.s32.totalorder %s16, 1
    %p39 = por %p37, %p38
    %p41 = scmp.ne.s32.totalorder %s24, %s40
    %p42 = scmp.eq.s32.totalorder %s16, 0
    %p43 = por %p41, %p42
    %s45 = sadd.s32 %s44, 1
    %p48 = scmp.eq.s32.totalorder %s10, 1
    %p49 = scmp.ne.s32.totalorder %s44, %s46
    %p50 = scmp.eq.s32.totalorder %s10, 0
    %p51 = por %p49, %p50
    %p52 = scmp.ne.s32.totalorder %s44, %s46
    %p53 = scmp.eq.s32.totalorder %s15, 1
    %p54 = por %p52, %p53
    %p55 = scmp.ne.s32.totalorder %s46, %s47
    %p56 = scmp.eq.s32.totalorder %s15, 0
    %p57 = por %p55, %p56
    %p58 = scmp.ne.s32.totalorder %s46, %s47
    %p59 = scmp.eq.s32.totalorder %s16, 1
    %p60 = por %p58, %p59
    %p62 = scmp.ne.s32.totalorder %s47, %s61
    %p63 = scmp.eq.s32.totalorder %s16, 0
    %p64 = por %p62, %p63
    %s66 = sadd.s32 %s65, 1
    %p69 = scmp.eq.s32.totalorder %s10, 1
    %p70 = scmp.ne.s32.totalorder %s65, %s67
    %p71 = scmp.eq.s32.totalorder %s10, 0
    %p72 = por %p70, %p71
    %p73 = scmp.ne.s32.totalorder %s65, %s67
    %p74 = scmp.eq.s32.totalorder %s15, 1
    %p75 = por %p73, %p74
    %p76 = scmp.ne.s32.totalorder %s67, %s68
    %p77 = scmp.eq.s32.totalorder %s15, 0
    %p78 = por %p76, %p77
    %p79 = scmp.ne.s32.totalorder %s67, %s68
    %p80 = scmp.eq.s32.totalorder %s16, 1
    %p81 = por %p79, %p80
    %p83 = scmp.ne.s32.totalorder %s68, %s82
    %p84 = scmp.eq.s32.totalorder %s16, 0
    %p85 = por %p83, %p84
    %s87 = sadd.s32 %s86, 1
    %p90 = scmp.eq.s32.totalorder %s10, 1
    %p91 = scmp.ne.s32.totalorder %s86, %s88
    %p92 = scmp.eq.s32.totalorder %s10, 0
    %p93 = por %p91, %p92
    %p94 = scmp.ne.s32.totalorder %s86, %s88
    %p95 = scmp.eq.s32.totalorder %s15, 1
    %p96 = por %p94, %p95
    %p97 = scmp.ne.s32.totalorder %s88, %s89
    %p98 = scmp.eq.s32.totalorder %s15, 0
    %p99 = por %p97, %p98
    %p100 = scmp.ne.s32.totalorder %s88, %s89
    %p101 = scmp.eq.s32.totalorder %s16, 1
    %p102 = por %p100, %p101
    %p104 = scmp.ne.s32.totalorder %s89, %s103
    %p105 = scmp.eq.s32.totalorder %s16, 0
    %p106 = por %p104, %p105
    %s107 = ssub.s32 %s10, %s17
    %p108 = scmp.eq.s32.totalorder %s107, 0
    %s110 = sadd.s32 %s109, 1
    %s111 = scalar_select %p108, %s109, %s110
    %p114 = pneg %p108
    %p115 = scmp.eq.s32.totalorder %s10, 1
    %p116 = por %p114, %p115
    %p117 = scmp.ne.s32.totalorder %s109, %s112
    %p118 = scmp.eq.s32.totalorder %s10, 0
    %p119 = por %p117, %p118
    %p120 = scmp.ne.s32.totalorder %s109, %s112
    %p121 = scmp.eq.s32.totalorder %s15, 1
    %p122 = por %p120, %p121
    %p123 = scmp.ne.s32.totalorder %s112, %s113
    %p124 = scmp.eq.s32.totalorder %s15, 0
    %p125 = por %p123, %p124
    %p126 = scmp.ne.s32.totalorder %s112, %s113
    %p127 = scmp.eq.s32.totalorder %s16, 1
    %p128 = por %p126, %p127
    %p130 = scmp.ne.s32.totalorder %s113, %s129
    %p131 = scmp.eq.s32.totalorder %s16, 0
    %p132 = por %p130, %p131
    %p133 = scmp.le.s32.totalorder 1, %s10
    %p134 = scmp.lt.s32.totalorder %s10, 3
    %p135 = pnand %p133, %p134
    %p136 = pneg %p135
    // Predicated region
    $region9: #{f.1} parent=5 // pred_check
      _
    $region10: #{f.1} parent=5 // pred_check_branch
      %138 = sbr.rel (%p135) target = $region12
    $region11: #{f.1} parent=5 // pred_region
      %s139 = ssub.s32 %s10, 1
      // Predicated region
      $region13: #{f.1} parent=11 // pred_check
        %p140 = pneg %p57
      $region14: #{f.1} parent=11 // pred_check_branch
        %142 = sbr.rel (%p140) target = $region16
      $region15: #{f.1} parent=11 // pred_region
        _
      $region16: #{f.1} parent=11 // pred_fallthru
        _
      // Predicated region
      $region17: #{f.1} parent=11 // pred_check
        %p143 = pneg %p78
      $region18: #{f.1} parent=11 // pred_check_branch
        %145 = sbr.rel (%p143) target = $region20
      $region19: #{f.1} parent=11 // pred_region
        _
      $region20: #{f.1} parent=11 // pred_fallthru
        _
      // Predicated region
      $region21: #{f.1} parent=11 // pred_check
        %p146 = pneg %p99
      $region22: #{f.1} parent=11 // pred_check_branch
        %148 = sbr.rel (%p146) target = $region24
      $region23: #{f.1} parent=11 // pred_region
        _
      $region24: #{f.1} parent=11 // pred_fallthru
        _
    $region12: #{f.1} parent=5 // pred_fallthru
      _
    %p149 = scmp.lt.s32.totalorder %s10, 2
    // Predicated region
    $region25: #{f.1} parent=5 // pred_check
      %p150 = pneg %p149
    $region26: #{f.1} parent=5 // pred_check_branch
      %152 = sbr.rel (%p150) target = $region28
    $region27: #{f.1} parent=5 // pred_region
      // Predicated region
      $region29: #{f.1} parent=27 // pred_check
        %p153 = pneg %p30
      $region30: #{f.1} parent=27 // pred_check_branch
        %155 = sbr.rel (%p153) target = $region32
      $region31: #{f.1} parent=27 // pred_region
        %s156 = smul.u32 16, %s10
        %p157 = scmp.lt.s32.totalorder %s156, 31
        %s158 = scalar_select %p157, %s156, 31
        %s159 = smul.addr %s158, 4
        %s160 = scalar_lea.vmem %s0, %s159
        %s161 = smul.u32 16, %s10
      $region32: #{f.1} parent=27 // pred_fallthru
        _
    $region28: #{f.1} parent=5 // pred_fallthru
      _
    %p162 = scmp.le.s32.totalorder 1, %s10
    %p163 = scmp.lt.s32.totalorder %s10, 3
    %p164 = pnand %p162, %p163
    %p165 = pneg %p164
    // Predicated region
    $region33: #{f.1} parent=5 // pred_check
      _
    $region34: #{f.1} parent=5 // pred_check_branch
      %167 = sbr.rel (%p164) target = $region36
    $region35: #{f.1} parent=5 // pred_region
      %s168 = ssub.s32 %s10, 1
      %s169 = smul.u32 16, %s15
      %p170 = scmp.lt.s32.totalorder %s169, 31
      %s171 = scalar_select %p170, %s169, 31
      %s172 = smul.addr %s171, 4
      %s173 = scalar_lea.vmem %s0, %s172
      %p174 = pneg %p36
      %p175 = pneg %p33
      %p176 = pneg %p57
      %p177 = pneg %p54
      %p178 = pneg %p78
      %p179 = pneg %p75
      %p180 = pneg %p99
      %p181 = pneg %p96
      %p182 = pneg %p125
      %p183 = pneg %p122
      %s184 = smul.u32 16, %s15
      %p185 = scmp.lt.s32.totalorder %s184, 31
      %s186 = scalar_select %p185, %s184, 31
      %s187 = smul.addr %s186, 8
      %s188 = scalar_lea.vmem %s4, %s187
      %s189 = smul.u32 16, %s15
      %p190 = scmp.lt.s32.totalorder %s189, 31
      %s191 = scalar_select %p190, %s189, 31
      %s192 = smul.addr %s191, 4
      %s193 = scalar_lea.vmem %s0, %s192
      %s194 = smul.u32 16, %s15
      %s195 = smul.u32 16, %s15
      %p196 = scmp.lt.s32.totalorder %s195, 31
      %s197 = scalar_select %p196, %s195, 31
      %s198 = smul.addr %s197, 8
      %s199 = scalar_lea.vmem %s4, %s198
      %s200 = smul.u32 16, %s15
      %v202 = vld [vmem:[%s193] sm:$0xf]
      %v203 = vld [vmem:[%s193 + $0x4] sm:$0xf]
      %v204 = vld [vmem:[%s193 + $0x8] sm:$0xf]
      %v205 = vld [vmem:[%s193 + $0xc] sm:$0xf]
      %v206 = vld [vmem:[%s193 + $0x10] sm:$0xf]
      %v207 = vld [vmem:[%s193 + $0x14] sm:$0xf]
      %v208 = vld [vmem:[%s193 + $0x18] sm:$0xf]
      %v209 = vld [vmem:[%s193 + $0x1c] sm:$0xf]
      %v210 = vld [vmem:[%s193 + $0x20] sm:$0xf]
      %v211 = vld [vmem:[%s193 + $0x24] sm:$0xf]
      %v212 = vld [vmem:[%s193 + $0x28] sm:$0xf]
      %v213 = vld [vmem:[%s193 + $0x2c] sm:$0xf]
      %v214 = vld [vmem:[%s193 + $0x30] sm:$0xf]
      %v215 = vld [vmem:[%s193 + $0x34] sm:$0xf]
      %v216 = vld [vmem:[%s193 + $0x38] sm:$0xf]
      %v217 = vld [vmem:[%s193 + $0x3c] sm:$0xf]
      %v218 = vld [vmem:[%s1] sm:$0xf]
      %v219 = vld [vmem:[%s1 + $0x4] sm:$0xf]
      %v220 = vld [vmem:[%s1 + $0x8] sm:$0xf]
      %v221 = vld [vmem:[%s1 + $0xc] sm:$0xf]
      %v222 = vld [vmem:[%s1 + $0x10] sm:$0xf]
      %v223 = vld [vmem:[%s1 + $0x14] sm:$0xf]
      %v224 = vld [vmem:[%s1 + $0x18] sm:$0xf]
      %v225 = vld [vmem:[%s1 + $0x1c] sm:$0xf]
      %v226 = vld [vmem:[%s1 + $0x20] sm:$0xf]
      %v227 = vld [vmem:[%s1 + $0x24] sm:$0xf]
      %v228 = vld [vmem:[%s1 + $0x28] sm:$0xf]
      %v229 = vld [vmem:[%s1 + $0x2c] sm:$0xf]
      %v230 = vld [vmem:[%s1 + $0x30] sm:$0xf]
      %v231 = vld [vmem:[%s1 + $0x34] sm:$0xf]
      %v232 = vld [vmem:[%s1 + $0x38] sm:$0xf]
      %v233 = vld [vmem:[%s1 + $0x3c] sm:$0xf]
      %v250 = vunpack.c.l.b16 %v202
      %v251 = vunpack.c.l.b16 %v203
      %v252 = vunpack.c.l.b16 %v204
      %v253 = vunpack.c.l.b16 %v205
      %v254 = vunpack.c.l.b16 %v206
      %v255 = vunpack.c.l.b16 %v207
      %v256 = vunpack.c.l.b16 %v208
      %v257 = vunpack.c.l.b16 %v209
      %v258 = vunpack.c.l.b16 %v210
      %v259 = vunpack.c.l.b16 %v211
      %v260 = vunpack.c.l.b16 %v212
      %v261 = vunpack.c.l.b16 %v213
      %v262 = vunpack.c.l.b16 %v214
      %v263 = vunpack.c.l.b16 %v215
      %v264 = vunpack.c.l.b16 %v216
      %v265 = vunpack.c.l.b16 %v217
      %v266 = vpack.c.b16 %v251, %v250
      %v267 = vpack.c.b16 %v253, %v252
      %v268 = vpack.c.b16 %v255, %v254
      %v269 = vpack.c.b16 %v257, %v256
      %v270 = vpack.c.b16 %v259, %v258
      %v271 = vpack.c.b16 %v261, %v260
      %v272 = vpack.c.b16 %v263, %v262
      %v273 = vpack.c.b16 %v265, %v264
      %v298 = vunpack.c.l.b16 %v218
      %v299 = vunpack.c.l.b16 %v219
      %v300 = vunpack.c.l.b16 %v220
      %v301 = vunpack.c.l.b16 %v221
      %v302 = vunpack.c.l.b16 %v222
      %v303 = vunpack.c.l.b16 %v223
      %v304 = vunpack.c.l.b16 %v224
      %v305 = vunpack.c.l.b16 %v225
      %v306 = vunpack.c.l.b16 %v226
      %v307 = vunpack.c.l.b16 %v227
      %v308 = vunpack.c.l.b16 %v228
      %v309 = vunpack.c.l.b16 %v229
      %v310 = vunpack.c.l.b16 %v230
      %v311 = vunpack.c.l.b16 %v231
      %v312 = vunpack.c.l.b16 %v232
      %v313 = vunpack.c.l.b16 %v233
      %v314 = vpack.c.b16 %v299, %v298
      %v315 = vpack.c.b16 %v301, %v300
      %v316 = vpack.c.b16 %v303, %v302
      %v317 = vpack.c.b16 %v305, %v304
      %v318 = vpack.c.b16 %v307, %v306
      %v319 = vpack.c.b16 %v309, %v308
      %v320 = vpack.c.b16 %v311, %v310
      %v321 = vpack.c.b16 %v313, %v312
      %330 = vmatprep.subr.bf16.mxu0 0
      %331 = vmatpush1.bf16.msra.mxu0 %v321
      %332 = vmatprep.subr.bf16.mxu0 0
      %333 = vmatpush1.bf16.msra.mxu0 %v320
      %334 = vmatprep.subr.bf16.mxu0 0
      %335 = vmatpush1.bf16.msra.mxu0 %v319
      %336 = vmatprep.subr.bf16.mxu0 0
      %337 = vmatpush1.bf16.msra.mxu0 %v318
      %338 = vmatprep.subr.bf16.mxu0 0
      %339 = vmatpush1.bf16.msra.mxu0 %v317
      %340 = vmatprep.subr.bf16.mxu0 0
      %341 = vmatpush1.bf16.msra.mxu0 %v316
      %342 = vmatprep.subr.bf16.mxu0 0
      %343 = vmatpush1.bf16.msra.mxu0 %v315
      %344 = vmatprep.subr.bf16.mxu0 0
      %345 = vmatpush1.bf16.msra.mxu0 %v314
      %346 = vmatprep.subr.bf16.mxu0 0
      %347 = vmatpush2.bf16.msra.mxu0 0
      %348 = vmatprep.subr.bf16.mxu0 0
      %349 = vmatpush2.bf16.msra.mxu0 0
      %350 = vmatprep.subr.bf16.mxu0 0
      %351 = vmatpush2.bf16.msra.mxu0 0
      %352 = vmatprep.subr.bf16.mxu0 0
      %353 = vmatpush2.bf16.msra.mxu0 0
      %354 = vmatprep.subr.bf16.mxu0 0
      %355 = vmatpush2.bf16.msra.mxu0 0
      %356 = vmatprep.subr.bf16.mxu0 0
      %357 = vmatpush2.bf16.msra.mxu0 0
      %358 = vmatprep.subr.bf16.mxu0 0
      %359 = vmatpush2.bf16.msra.mxu0 0
      %360 = vmatprep.subr.bf16.mxu0 0
      %361 = vmatpush2.bf16.msra.mxu0 0
      %362 = vmatprep.mubr.bf16.mxu0 0
      %363 = vmatmul.mubr.bf16.gmra.mxu0 %v266
      %v364 = vpop.f32.mrf.mxu0
      %v365 = vadd.f32 0.0, %v364
      %v366 = vpop.f32.mrf.mxu0
      %v367 = vpop.f32.mrf.mxu0
      %v368 = vadd.f32 0.0, %v367
      %v369 = vpop.f32.mrf.mxu0
      %370 = vmatprep.mubr.bf16.mxu0 0
      %371 = vmatmul.mubr.bf16.gmra.mxu0 %v267
      %v372 = vpop.f32.mrf.mxu0
      %v373 = vadd.f32 0.0, %v372
      %v374 = vpop.f32.mrf.mxu0
      %v375 = vpop.f32.mrf.mxu0
      %v376 = vadd.f32 0.0, %v375
      %v377 = vpop.f32.mrf.mxu0
      %378 = vmatprep.mubr.bf16.mxu0 0
      %379 = vmatmul.mubr.bf16.gmra.mxu0 %v268
      %v380 = vpop.f32.mrf.mxu0
      %v381 = vadd.f32 0.0, %v380
      %v382 = vpop.f32.mrf.mxu0
      %v383 = vpop.f32.mrf.mxu0
      %v384 = vadd.f32 0.0, %v383
      %v385 = vpop.f32.mrf.mxu0
      %386 = vmatprep.mubr.bf16.mxu0 0
      %387 = vmatmul.mubr.bf16.gmra.mxu0 %v269
      %v388 = vpop.f32.mrf.mxu0
      %v389 = vadd.f32 0.0, %v388
      %v390 = vpop.f32.mrf.mxu0
      %v391 = vpop.f32.mrf.mxu0
      %v392 = vadd.f32 0.0, %v391
      %v393 = vpop.f32.mrf.mxu0
      %394 = vmatprep.mubr.bf16.mxu0 0
      %395 = vmatmul.mubr.bf16.gmra.mxu0 %v270
      %v396 = vpop.f32.mrf.mxu0
      %v397 = vadd.f32 0.0, %v396
      %v398 = vpop.f32.mrf.mxu0
      %v399 = vpop.f32.mrf.mxu0
      %v400 = vadd.f32 0.0, %v399
      %v401 = vpop.f32.mrf.mxu0
      %402 = vmatprep.mubr.bf16.mxu0 0
      %403 = vmatmul.mubr.bf16.gmra.mxu0 %v271
      %v404 = vpop.f32.mrf.mxu0
      %v405 = vadd.f32 0.0, %v404
      %v406 = vpop.f32.mrf.mxu0
      %v407 = vpop.f32.mrf.mxu0
      %v408 = vadd.f32 0.0, %v407
      %v409 = vpop.f32.mrf.mxu0
      %410 = vmatprep.mubr.bf16.mxu0 0
      %411 = vmatmul.mubr.bf16.gmra.mxu0 %v272
      %v412 = vpop.f32.mrf.mxu0
      %v413 = vadd.f32 0.0, %v412
      %v414 = vpop.f32.mrf.mxu0
      %v415 = vpop.f32.mrf.mxu0
      %v416 = vadd.f32 0.0, %v415
      %v417 = vpop.f32.mrf.mxu0
      %418 = vmatprep.mubr.bf16.mxu0 0
      %419 = vmatmul.mubr.bf16.gmra.mxu0 %v273
      %v420 = vpop.f32.mrf.mxu0
      %v421 = vadd.f32 0.0, %v420
      %v422 = vpop.f32.mrf.mxu0
      %v423 = vpop.f32.mrf.mxu0
      %v424 = vadd.f32 0.0, %v423
      %v425 = vpop.f32.mrf.mxu0
      %426 = vdwg.mxu0
      %v427 = vld [vmem:[%s2] sm:$0x1]
      %v429 = vlaneseq
      %v430 = vshrl.u32 %v429, 7
      %v431 = vsub.s32 0, %v430
      %v432 = vrot.slane %v427, %v431
      %v434 = vmul.f32 %v365, %v432
      %v435 = vmul.f32 %v368, %v432
      %v436 = vmul.f32 %v373, %v432
      %v437 = vmul.f32 %v376, %v432
      %v438 = vmul.f32 %v381, %v432
      %v439 = vmul.f32 %v384, %v432
      %v440 = vmul.f32 %v389, %v432
      %v441 = vmul.f32 %v392, %v432
      %v442 = vmul.f32 %v397, %v432
      %v443 = vmul.f32 %v400, %v432
      %v444 = vmul.f32 %v405, %v432
      %v445 = vmul.f32 %v408, %v432
      %v446 = vmul.f32 %v413, %v432
      %v447 = vmul.f32 %v416, %v432
      %v448 = vmul.f32 %v421, %v432
      %v449 = vmul.f32 %v424, %v432
      %v450 = vld [vmem:[%s3] sm:$0x1]
      %v452 = vlaneseq
      %v453 = vshrl.u32 %v452, 7
      %v454 = vsub.s32 0, %v453
      %v455 = vrot.slane %v450, %v454
      %v457 = vadd.f32 %v434, %v455
      %v458 = vadd.f32 %v435, %v455
      %v459 = vadd.f32 %v436, %v455
      %v460 = vadd.f32 %v437, %v455
      %v461 = vadd.f32 %v438, %v455
      %v462 = vadd.f32 %v439, %v455
      %v463 = vadd.f32 %v440, %v455
      %v464 = vadd.f32 %v441, %v455
      %v465 = vadd.f32 %v442, %v455
      %v466 = vadd.f32 %v443, %v455
      %v467 = vadd.f32 %v444, %v455
      %v468 = vadd.f32 %v445, %v455
      %v469 = vadd.f32 %v446, %v455
      %v470 = vadd.f32 %v447, %v455
      %v471 = vadd.f32 %v448, %v455
      %v472 = vadd.f32 %v449, %v455
      %v473 = vmax.f32 %v457, 0.0
      %v474 = vmax.f32 %v458, 0.0
      %v475 = vmax.f32 %v459, 0.0
      %v476 = vmax.f32 %v460, 0.0
      %v477 = vmax.f32 %v461, 0.0
      %v478 = vmax.f32 %v462, 0.0
      %v479 = vmax.f32 %v463, 0.0
      %v480 = vmax.f32 %v464, 0.0
      %v481 = vmax.f32 %v465, 0.0
      %v482 = vmax.f32 %v466, 0.0
      %v483 = vmax.f32 %v467, 0.0
      %v484 = vmax.f32 %v468, 0.0
      %v485 = vmax.f32 %v469, 0.0
      %v486 = vmax.f32 %v470, 0.0
      %v487 = vmax.f32 %v471, 0.0
      %v488 = vmax.f32 %v472, 0.0
      %489 = vst [vmem:[%s199] sm:$0xff] %v473
      %490 = vst [vmem:[%s199 + $0x8] sm:$0xff] %v474
      %491 = vst [vmem:[%s199 + $0x10] sm:$0xff] %v475
      %492 = vst [vmem:[%s199 + $0x18] sm:$0xff] %v476
      %493 = vst [vmem:[%s199 + $0x20] sm:$0xff] %v477
      %494 = vst [vmem:[%s199 + $0x28] sm:$0xff] %v478
      %495 = vst [vmem:[%s199 + $0x30] sm:$0xff] %v479
      %496 = vst [vmem:[%s199 + $0x38] sm:$0xff] %v480
      %497 = vst [vmem:[%s199 + $0x40] sm:$0xff] %v481
      %498 = vst [vmem:[%s199 + $0x48] sm:$0xff] %v482
      %499 = vst [vmem:[%s199 + $0x50] sm:$0xff] %v483
      %500 = vst [vmem:[%s199 + $0x58] sm:$0xff] %v484
      %501 = vst [vmem:[%s199 + $0x60] sm:$0xff] %v485
      %502 = vst [vmem:[%s199 + $0x68] sm:$0xff] %v486
      %503 = vst [vmem:[%s199 + $0x70] sm:$0xff] %v487
      %504 = vst [vmem:[%s199 + $0x78] sm:$0xff] %v488
      %s505 = smul.u32 16, %s15
      %p506 = scmp.lt.s32.totalorder %s505, 31
      %s507 = scalar_select %p506, %s505, 31
      %s508 = smul.addr %s507, 8
      %s509 = scalar_lea.vmem %s4, %s508
      // Predicated region
      $region37: #{f.1} parent=35 // pred_check
        %p510 = pneg %p122
      $region38: #{f.1} parent=35 // pred_check_branch
        %512 = sbr.rel (%p510) target = $region40
      $region39: #{f.1} parent=35 // pred_region
        %s513 = smul.u32 16, %s15
      $region40: #{f.1} parent=35 // pred_fallthru
        _
    $region36: #{f.1} parent=5 // pred_fallthru
      _
    %p514 = scmp.le.s32.totalorder 2, %s10
    // Predicated region
    $region41: #{f.1} parent=5 // pred_check
      %p515 = pneg %p514
    $region42: #{f.1} parent=5 // pred_check_branch
      %517 = sbr.rel (%p515) target = $region44
    $region43: #{f.1} parent=5 // pred_region
      %s518 = ssub.s32 %s10, 2
      // Predicated region
      $region45: #{f.1} parent=43 // pred_check
        %p519 = pneg %p128
      $region46: #{f.1} parent=43 // pred_check_branch
        %521 = sbr.rel (%p519) target = $region48
      $region47: #{f.1} parent=43 // pred_region
        %s522 = smul.u32 16, %s16
        %p523 = scmp.lt.s32.totalorder %s522, 31
        %s524 = scalar_select %p523, %s522, 31
        %s525 = smul.addr %s524, 8
        %s526 = scalar_lea.vmem %s4, %s525
      $region48: #{f.1} parent=43 // pred_fallthru
        _
    $region44: #{f.1} parent=5 // pred_fallthru
      _
  $region6: #{f.1} parent=0 // loop_footer
    %s14 = sadd.s32 1, %s10
  $region7: #{f.1} parent=0 // loop_footer_branch
    %9 = sbr.rel target = $region3
  $region8: #{f.1} parent=0 // loop_exit
    _

</llo_original>
